<compile_context>
chip_gen: v7x
topology: tpu7x:2x2x1
jax: 0.10.0
libtpu: 0.0.40
codegen_flags: <defaults>
</compile_context>

<pallas_src>
import functools

import jax
import jax.numpy as jnp
from jax import lax
from jax.experimental import pallas as pl
from jax.experimental.pallas import tpu as pltpu

BN_EPS = 1e-5


def _round_up(x, m):
    return (x + m - 1) // m * m


def _registrator_kernel(xs_ref, xq_ref, w_ref, os_ref, oq_ref, *,
                        f_dim, f_pad, use_bf16):
    """Both Registrator branches in ONE kernel invocation (single grid step).

    xs/xq : [n_s, F] / [n_q, F]   un-padded activations
    w     : [2, Fp+8, Zp]         rows [0, F): W^T (Linear bias dropped),
                                  row Fp: gamma, row Fp+1: beta, rest zero.
                                  Padded gamma columns are 0 so padded output
                                  columns come out exactly 0 (do not change!).
    os/oq : [n_s, Zp] / [n_q, Zp] lane-padded outputs
    """

    def branch(b, x_ref, o_ref):
        wb = w_ref[b]                                # (Fp+8, Zp), one load
        w = wb[:f_dim, :]
        gamma = wb[f_pad:f_pad + 1, :]
        beta = wb[f_pad + 1:f_pad + 2, :]

        x = x_ref[...]
        if use_bf16:
            # MXU is bf16-native; only enabled for realistic F/Z (see wrapper).
            y = jnp.dot(x.astype(jnp.bfloat16), w.astype(jnp.bfloat16),
                        preferred_element_type=jnp.float32)
        else:
            y = jnp.dot(x, w, preferred_element_type=jnp.float32)

        # Single-pass train-mode BN statistics (biased variance), f32 accum.
        # NOTE: PyTorch BatchNorm1d errors on batch size 1 in training mode;
        # here N is static and assumed > 1.
        inv_n = jnp.float32(1.0 / x.shape[0])
        s1 = jnp.sum(y, axis=0, keepdims=True)
        s2 = jnp.sum(y * y, axis=0, keepdims=True)
        mean = s1 * inv_n
        var = jnp.maximum(s2 * inv_n - mean * mean, 0.0)

        scale = gamma * lax.rsqrt(var + BN_EPS)      # padded cols: gamma=0 -> 0
        out = (y - mean) * scale + beta
        o_ref[...] = jnp.maximum(out, 0.0).astype(o_ref.dtype)

    # Statically unrolled: both branches inside one grid step (no per-step
    # pipeline bookkeeping; the LLO scheduler interleaves the two matmuls).
    branch(0, xs_ref, os_ref)
    branch(1, xq_ref, oq_ref)


def init_registrator_params(key, f_dim, z_dim):
    """Deterministic synthetic params mimicking PyTorch init shapes."""
    ks = jax.random.split(key, 4)
    bound = 1.0 / jnp.sqrt(jnp.float32(f_dim))
    # Linear weights stored transposed: [f_dim, z_dim]
    w_s = jax.random.uniform(ks[0], (f_dim, z_dim), jnp.float32, -bound, bound)
    b_s = jax.random.uniform(ks[1], (z_dim,), jnp.float32, -bound, bound)
    w_q = jax.random.uniform(ks[2], (f_dim, z_dim), jnp.float32, -bound, bound)
    b_q = jax.random.uniform(ks[3], (z_dim,), jnp.float32, -bound, bound)
    # BatchNorm1d affine params (PyTorch default init: gamma=1, beta=0)
    g_s = jnp.ones((z_dim,), jnp.float32)
    be_s = jnp.zeros((z_dim,), jnp.float32)
    g_q = jnp.ones((z_dim,), jnp.float32)
    be_q = jnp.zeros((z_dim,), jnp.float32)
    return dict(w_s=w_s, b_s=b_s, g_s=g_s, be_s=be_s,
                w_q=w_q, b_q=b_q, g_q=g_q, be_q=be_q)


def prepare_registrator_params(params):
    """ONE-TIME packing of weights + gamma/beta into a single [2, Fp+8, Zp]
    block per-call. Do NOT call this per forward (hoisted per perf review).

    Linear biases are intentionally excluded: train-mode BN cancels them.
    """
    f_dim, z_dim = params["w_s"].shape
    f_pad = _round_up(f_dim, 8)                 # sublane-align gamma/beta rows
    z_pad = _round_up(max(z_dim, 1), 128)       # lane-dense output columns

    def pack(w, g, be):
        blk = jnp.zeros((f_pad + 8, z_pad), jnp.float32)
        blk = blk.at[:f_dim, :z_dim].set(w.astype(jnp.float32))
        # Padded gamma columns MUST stay 0 (keeps padded outputs exactly 0).
        blk = blk.at[f_pad, :z_dim].set(g.astype(jnp.float32))
        blk = blk.at[f_pad + 1, :z_dim].set(be.astype(jnp.float32))
        return blk

    w_stk = jnp.stack([pack(params["w_s"], params["g_s"], params["be_s"]),
                       pack(params["w_q"], params["g_q"], params["be_q"])])
    return dict(w_stk=w_stk, f_dim=f_dim, z_dim=z_dim,
                f_pad=f_pad, z_pad=z_pad)


def make_registrator(params, *, out_dtype=jnp.float32, use_bf16_matmul=None):
    """Build a jitted forward closing over the pre-packed parameters."""
    prep = prepare_registrator_params(params)
    f_dim, z_dim = prep["f_dim"], prep["z_dim"]
    f_pad, z_pad = prep["f_pad"], prep["z_pad"]
    w_stk = prep["w_stk"]

    if use_bf16_matmul is None:
        # Gate bf16 operands on size: irrelevant (and a precision hit for the
        # reference check) at tiny F/Z; ~2-4x MXU throughput at >=512.
        use_bf16_matmul = min(f_dim, z_dim) >= 512

    kernel = functools.partial(_registrator_kernel, f_dim=f_dim, f_pad=f_pad,
                               use_bf16=use_bf16_matmul)

    @jax.jit
    def forward(w_blk, support_set, query_set):
        n_s = support_set.shape[0]
        n_q = query_set.shape[0]
        sup_out, qry_out = pl.pallas_call(
            kernel,
            out_shape=(jax.ShapeDtypeStruct((n_s, z_pad), out_dtype),
                       jax.ShapeDtypeStruct((n_q, z_pad), out_dtype)),
            grid=(1,),
            in_specs=[
                pl.BlockSpec((n_s, f_dim), lambda i: (0, 0)),
                pl.BlockSpec((n_q, f_dim), lambda i: (0, 0)),
                pl.BlockSpec((2, f_pad + 8, z_pad), lambda i: (0, 0, 0)),
            ],
            out_specs=(
                pl.BlockSpec((n_s, z_pad), lambda i: (0, 0)),
                pl.BlockSpec((n_q, z_pad), lambda i: (0, 0)),
            ),
            compiler_params=pltpu.CompilerParams(
                dimension_semantics=("arbitrary",)),
        )(support_set.astype(jnp.float32),
          query_set.astype(jnp.float32),
          w_blk)
        return sup_out[:, :z_dim], qry_out[:, :z_dim]

    def apply(support_set, query_set):
        return forward(w_stk, support_set, query_set)

    return apply


if __name__ == "__main__":
    f_dim, z_dim = 32, 32
    n_support, n_query = 8, 12   # unequal batches exercise the unified path

    key = jax.random.PRNGKey(0)
    k_param, k_sup, k_qry = jax.random.split(key, 3)

    params = init_registrator_params(k_param, f_dim, z_dim)
    support_set = jax.random.normal(k_sup, (n_support, f_dim), jnp.float32)
    query_set = jax.random.normal(k_qry, (n_query, f_dim), jnp.float32)

    registrator = make_registrator(params)
    sup_out, qry_out = registrator(support_set, query_set)
    jax.block_until_ready((sup_out, qry_out))

    # Pure-JAX reference WITH the Linear bias, proving the bias-free fused
    # kernel matches the training-mode BN forward exactly.
    def ref_branch(x, w, b, g, be):
        y = x @ w + b
        mean = y.mean(axis=0, keepdims=True)
        var = ((y - mean) ** 2).mean(axis=0, keepdims=True)
        return jnp.maximum((y - mean) / jnp.sqrt(var + BN_EPS) * g + be, 0.0)

    ref_sup = ref_branch(support_set, params["w_s"], params["b_s"],
                         params["g_s"], params["be_s"])
    ref_qry = ref_branch(query_set, params["w_q"], params["b_q"],
                         params["g_q"], params["be_q"])
    assert sup_out.shape == (n_support, z_dim)
    assert qry_out.shape == (n_query, z_dim)
    assert jnp.allclose(sup_out, ref_sup, atol=1e-4, rtol=1e-4)
    assert jnp.allclose(qry_out, ref_qry, atol=1e-4, rtol=1e-4)

    # Equal-batch case runs through the exact same single fused call.
    sup_out2, qry_out2 = registrator(support_set, support_set)
    jax.block_until_ready((sup_out2, qry_out2))
    ref_q2 = ref_branch(support_set, params["w_q"], params["b_q"],
                        params["g_q"], params["be_q"])
    assert jnp.allclose(sup_out2, ref_sup, atol=1e-4, rtol=1e-4)
    assert jnp.allclose(qry_out2, ref_q2, atol=1e-4, rtol=1e-4)

    print("KERNEL_OK")
</pallas_src>

<mosaic_0001>
module attributes {stable_mosaic.version = 11 : i64} {
  func.func @_registrator_kernel(%arg0: i32, %arg1: memref<8x32xf32, #tpu.memory_space<vmem>>, %arg2: memref<12x32xf32, #tpu.memory_space<vmem>>, %arg3: memref<2x40x128xf32, #tpu.memory_space<vmem>>, %arg4: memref<8x128xf32, #tpu.memory_space<vmem>>, %arg5: memref<12x128xf32, #tpu.memory_space<vmem>>) attributes {dimension_semantics = [#tpu.dimension_semantics<arbitrary>], iteration_bounds = array<i64: 1>, scalar_prefetch = 0 : i64, scratch_operands = 0 : i64, tpu.core_type = #tpu.core_type<tc>, window_params = [{pipeline_mode = #tpu.pipeline_mode<synchronous>, transform_indices = @transform_0, window_bounds = array<i64: 8, 32>}, {pipeline_mode = #tpu.pipeline_mode<synchronous>, transform_indices = @transform_1, window_bounds = array<i64: 12, 32>}, {pipeline_mode = #tpu.pipeline_mode<synchronous>, transform_indices = @transform_2, window_bounds = array<i64: 2, 40, 128>}, {pipeline_mode = #tpu.pipeline_mode<synchronous>, transform_indices = @transform_3, window_bounds = array<i64: 8, 128>}, {pipeline_mode = #tpu.pipeline_mode<synchronous>, transform_indices = @transform_4, window_bounds = array<i64: 12, 128>}]} {
    %c0 = arith.constant 0 : index
    %c0_0 = arith.constant 0 : index
    %c0_1 = arith.constant 0 : index
    %0 = vector.load %arg3[%c0, %c0_0, %c0_1] : memref<2x40x128xf32, #tpu.memory_space<vmem>>, vector<1x40x128xf32>
    %1 = vector.shape_cast %0 : vector<1x40x128xf32> to vector<40x128xf32>
    %2 = vector.extract_strided_slice %1 {offsets = [0, 0], sizes = [32, 128], strides = [1, 1]} : vector<40x128xf32> to vector<32x128xf32>
    %3 = vector.extract_strided_slice %1 {offsets = [32, 0], sizes = [1, 128], strides = [1, 1]} : vector<40x128xf32> to vector<1x128xf32>
    %4 = vector.extract_strided_slice %1 {offsets = [33, 0], sizes = [1, 128], strides = [1, 1]} : vector<40x128xf32> to vector<1x128xf32>
    %c0_2 = arith.constant 0 : index
    %c0_3 = arith.constant 0 : index
    %5 = vector.load %arg1[%c0_2, %c0_3] : memref<8x32xf32, #tpu.memory_space<vmem>>, vector<8x32xf32>
    %cst = arith.constant dense<0.000000e+00> : vector<8x128xf32>
    %6 = tpu.matmul %5, %2, %cst {dimension_numbers = #tpu.dot_dimension_numbers<[1], [0], [0], [1], [0, 0, 1, 1], [], []>} : vector<8x32xf32>, vector<32x128xf32>, vector<8x128xf32> -> vector<8x128xf32>
    %cst_4 = arith.constant dense<0.000000e+00> : vector<128xf32>
    %7 = vector.multi_reduction <add>, %6, %cst_4 [0] : vector<8x128xf32> to vector<128xf32>
    %8 = vector.shape_cast %7 : vector<128xf32> to vector<1x128xf32>
    %9 = arith.mulf %6, %6 : vector<8x128xf32>
    %cst_5 = arith.constant dense<0.000000e+00> : vector<128xf32>
    %10 = vector.multi_reduction <add>, %9, %cst_5 [0] : vector<8x128xf32> to vector<128xf32>
    %11 = vector.shape_cast %10 : vector<128xf32> to vector<1x128xf32>
    %cst_6 = arith.constant 1.250000e-01 : f32
    %12 = vector.broadcast %cst_6 : f32 to vector<1x128xf32>
    %13 = arith.mulf %8, %12 : vector<1x128xf32>
    %cst_7 = arith.constant 1.250000e-01 : f32
    %14 = vector.broadcast %cst_7 : f32 to vector<1x128xf32>
    %15 = arith.mulf %11, %14 : vector<1x128xf32>
    %16 = arith.mulf %13, %13 : vector<1x128xf32>
    %17 = arith.subf %15, %16 : vector<1x128xf32>
    %cst_8 = arith.constant 0.000000e+00 : f32
    %18 = vector.broadcast %cst_8 : f32 to vector<1x128xf32>
    %19 = arith.maximumf %17, %18 : vector<1x128xf32>
    %cst_9 = arith.constant 9.99999974E-6 : f32
    %20 = vector.broadcast %cst_9 : f32 to vector<1x128xf32>
    %21 = arith.addf %19, %20 : vector<1x128xf32>
    %22 = math.rsqrt %21 : vector<1x128xf32>
    %23 = arith.mulf %3, %22 : vector<1x128xf32>
    %24 = vector.broadcast %13 : vector<1x128xf32> to vector<8x128xf32>
    %25 = arith.subf %6, %24 : vector<8x128xf32>
    %26 = vector.broadcast %23 : vector<1x128xf32> to vector<8x128xf32>
    %27 = arith.mulf %25, %26 : vector<8x128xf32>
    %28 = vector.broadcast %4 : vector<1x128xf32> to vector<8x128xf32>
    %29 = arith.addf %27, %28 : vector<8x128xf32>
    %cst_10 = arith.constant 0.000000e+00 : f32
    %30 = vector.broadcast %cst_10 : f32 to vector<8x128xf32>
    %31 = arith.maximumf %29, %30 : vector<8x128xf32>
    %c0_11 = arith.constant 0 : index
    %c0_12 = arith.constant 0 : index
    %32 = vector.load %arg4[%c0_11, %c0_12] : memref<8x128xf32, #tpu.memory_space<vmem>>, vector<8x128xf32>
    tpu.vector_store %arg4[%c0_11, %c0_12], %31 {strides = array<i32>} : memref<8x128xf32, #tpu.memory_space<vmem>>, vector<8x128xf32>,
    %c1 = arith.constant 1 : index
    %c0_13 = arith.constant 0 : index
    %c0_14 = arith.constant 0 : index
    %33 = vector.load %arg3[%c1, %c0_13, %c0_14] : memref<2x40x128xf32, #tpu.memory_space<vmem>>, vector<1x40x128xf32>
    %34 = vector.shape_cast %33 : vector<1x40x128xf32> to vector<40x128xf32>
    %35 = vector.extract_strided_slice %34 {offsets = [0, 0], sizes = [32, 128], strides = [1, 1]} : vector<40x128xf32> to vector<32x128xf32>
    %36 = vector.extract_strided_slice %34 {offsets = [32, 0], sizes = [1, 128], strides = [1, 1]} : vector<40x128xf32> to vector<1x128xf32>
    %37 = vector.extract_strided_slice %34 {offsets = [33, 0], sizes = [1, 128], strides = [1, 1]} : vector<40x128xf32> to vector<1x128xf32>
    %c0_15 = arith.constant 0 : index
    %c0_16 = arith.constant 0 : index
    %38 = vector.load %arg2[%c0_15, %c0_16] : memref<12x32xf32, #tpu.memory_space<vmem>>, vector<12x32xf32>
    %cst_17 = arith.constant dense<0.000000e+00> : vector<12x128xf32>
    %39 = tpu.matmul %38, %35, %cst_17 {dimension_numbers = #tpu.dot_dimension_numbers<[1], [0], [0], [1], [0, 0, 1, 1], [], []>} : vector<12x32xf32>, vector<32x128xf32>, vector<12x128xf32> -> vector<12x128xf32>
    %cst_18 = arith.constant dense<0.000000e+00> : vector<128xf32>
    %40 = vector.multi_reduction <add>, %39, %cst_18 [0] : vector<12x128xf32> to vector<128xf32>
    %41 = vector.shape_cast %40 : vector<128xf32> to vector<1x128xf32>
    %42 = arith.mulf %39, %39 : vector<12x128xf32>
    %cst_19 = arith.constant dense<0.000000e+00> : vector<128xf32>
    %43 = vector.multi_reduction <add>, %42, %cst_19 [0] : vector<12x128xf32> to vector<128xf32>
    %44 = vector.shape_cast %43 : vector<128xf32> to vector<1x128xf32>
    %cst_20 = arith.constant 0.0833333358 : f32
    %45 = vector.broadcast %cst_20 : f32 to vector<1x128xf32>
    %46 = arith.mulf %41, %45 : vector<1x128xf32>
    %cst_21 = arith.constant 0.0833333358 : f32
    %47 = vector.broadcast %cst_21 : f32 to vector<1x128xf32>
    %48 = arith.mulf %44, %47 : vector<1x128xf32>
    %49 = arith.mulf %46, %46 : vector<1x128xf32>
    %50 = arith.subf %48, %49 : vector<1x128xf32>
    %cst_22 = arith.constant 0.000000e+00 : f32
    %51 = vector.broadcast %cst_22 : f32 to vector<1x128xf32>
    %52 = arith.maximumf %50, %51 : vector<1x128xf32>
    %cst_23 = arith.constant 9.99999974E-6 : f32
    %53 = vector.broadcast %cst_23 : f32 to vector<1x128xf32>
    %54 = arith.addf %52, %53 : vector<1x128xf32>
    %55 = math.rsqrt %54 : vector<1x128xf32>
    %56 = arith.mulf %36, %55 : vector<1x128xf32>
    %57 = vector.broadcast %46 : vector<1x128xf32> to vector<12x128xf32>
    %58 = arith.subf %39, %57 : vector<12x128xf32>
    %59 = vector.broadcast %56 : vector<1x128xf32> to vector<12x128xf32>
    %60 = arith.mulf %58, %59 : vector<12x128xf32>
    %61 = vector.broadcast %37 : vector<1x128xf32> to vector<12x128xf32>
    %62 = arith.addf %60, %61 : vector<12x128xf32>
    %cst_24 = arith.constant 0.000000e+00 : f32
    %63 = vector.broadcast %cst_24 : f32 to vector<12x128xf32>
    %64 = arith.maximumf %62, %63 : vector<12x128xf32>
    %c0_25 = arith.constant 0 : index
    %c0_26 = arith.constant 0 : index
    %65 = vector.load %arg5[%c0_25, %c0_26] : memref<12x128xf32, #tpu.memory_space<vmem>>, vector<12x128xf32>
    tpu.vector_store %arg5[%c0_25, %c0_26], %64 {strides = array<i32>} : memref<12x128xf32, #tpu.memory_space<vmem>>, vector<12x128xf32>,
    return
  }
  func.func @transform_0(%arg0: i32) -> (i32, i32) {
    %c0_i32 = arith.constant 0 : i32
    %c0_i32_0 = arith.constant 0 : i32
    %c0_i32_1 = arith.constant 0 : i32
    return %c0_i32, %c0_i32_0 : i32, i32
  }
  func.func @transform_1(%arg0: i32) -> (i32, i32) {
    %c0_i32 = arith.constant 0 : i32
    %c0_i32_0 = arith.constant 0 : i32
    %c0_i32_1 = arith.constant 0 : i32
    return %c0_i32, %c0_i32_0 : i32, i32
  }
  func.func @transform_2(%arg0: i32) -> (i32, i32, i32) {
    %c0_i32 = arith.constant 0 : i32
    %c0_i32_0 = arith.constant 0 : i32
    %c0_i32_1 = arith.constant 0 : i32
    %c0_i32_2 = arith.constant 0 : i32
    return %c0_i32, %c0_i32_0, %c0_i32_1 : i32, i32, i32
  }
  func.func @transform_3(%arg0: i32) -> (i32, i32) {
    %c0_i32 = arith.constant 0 : i32
    %c0_i32_0 = arith.constant 0 : i32
    %c0_i32_1 = arith.constant 0 : i32
    return %c0_i32, %c0_i32_0 : i32, i32
  }
  func.func @transform_4(%arg0: i32) -> (i32, i32) {
    %c0_i32 = arith.constant 0 : i32
    %c0_i32_0 = arith.constant 0 : i32
    %c0_i32_1 = arith.constant 0 : i32
    return %c0_i32, %c0_i32_0 : i32, i32
  }
}

</mosaic_0001>

<llo_original>
// kernel: forward.1
$region0: #{forward.1}
  #allocation0 [shape = 'u32[]', space=smem, size = 0x4, offset = 0x4, fixed_abs, tag = 'smem constant byte address 0x4 - core index']
  #allocation1 [shape = 'u32[144,128]{1,0:T(1,128)}', space=vmem, size = 0x12000, scoped, tag = 'internal scratch']
  %s0 = inlined_call_operand.hbm [shape: f32[8,32], index: 0, kind: input, shape index: {}]
  %s1 = inlined_call_operand.hbm [shape: f32[12,32], index: 1, kind: input, shape index: {}]
  %s2 = inlined_call_operand.hbm [shape: f32[2,40,128], index: 2, kind: input, shape index: {}]
  %s3 = inlined_call_operand.hbm [shape: f32[8,128], index: 3, kind: output, shape index: {0}]
  %s4 = inlined_call_operand.hbm [shape: f32[12,128], index: 4, kind: output, shape index: {1}]
  %5 = xla_tuple %s3, %s4
  %s6 = sld [smem:[#allocation0]]
  $region42: #{forward.1} parent=0
    _
  %s8 = ssub.s32 1, %s6
  %s9 = scalar_select 0, %s8, %s6
  $region1: #{forward.1} parent=0
    #allocation2 [shape = 'u8[4096]{0}', space=vmem, size = 0x1000, scoped, tag = 'input window, operand 0, single buffered']
    #allocation3 [shape = 's32[1]{0}', space=sflag, size = 0x4, scoped, tag = 'scoped memory for forward.1']
    #allocation4 [shape = 's32[1]{0}', space=sflag, size = 0x4, scoped, tag = 'scoped memory for forward.1']
    #allocation5 [shape = 'u8[8192]{0}', space=vmem, size = 0x2000, scoped, tag = 'input window, operand 1, single buffered']
    #allocation6 [shape = 's32[1]{0}', space=sflag, size = 0x4, scoped, tag = 'scoped memory for forward.1']
    #allocation7 [shape = 'u8[40960]{0}', space=vmem, size = 0xa000, scoped, tag = 'input window, operand 2, single buffered']
    #allocation8 [shape = 'u8[4096]{0}', space=vmem, size = 0x1000, scoped, tag = 'output window, operand 0, single buffered']
    #allocation9 [shape = 'u8[8192]{0}', space=vmem, size = 0x2000, scoped, tag = 'output window, operand 1, single buffered']
    #allocation10 [shape = 's32[1]{0}', space=sflag, size = 0x4, scoped, tag = 'scoped memory for forward.1']
    %10 = vsyncpa [#allocation3], 0
    %11 = vsyncpa [#allocation6], 0
    %12 = vsyncpa [#allocation4], 0
    %13 = vsyncpa [#allocation10], 0
    // Predicated region
    $region2: #{forward.1} parent=1 // pred_check
      _
    $region3: #{forward.1} parent=1 // pred_check_branch
      %15 = sbr.rel (0) target = $region5
    $region4: #{forward.1} parent=1 // pred_region
      %s17 = ssub.s32 128, 128
      %18 = vsyncadd [#allocation3], %s17
      %s20 = sshll.u32 [#allocation2], 4
      %s21 = int_to_ptr.vmem [resolvable:$true] %s20
      %23 = dma.hbm_to_vmem [thread:$0]  %s0, 128, %s21, [#allocation3]
    $region5: #{forward.1} parent=1 // pred_fallthru
      _
    // Predicated region
    $region6: #{forward.1} parent=1 // pred_check
      _
    $region7: #{forward.1} parent=1 // pred_check_branch
      %25 = sbr.rel (0) target = $region9
    $region8: #{forward.1} parent=1 // pred_region
      %s27 = ssub.s32 256, 256
      %28 = vsyncadd [#allocation6], %s27
      %s29 = sshll.u32 [#allocation5], 4
      %s30 = int_to_ptr.vmem [resolvable:$true] %s29
      %35 = dma.hbm_to_vmem [thread:$0]  %s1, 256, %s30, [#allocation6], 128, 128, 8
    $region9: #{forward.1} parent=1 // pred_fallthru
      _
    // Predicated region
    $region10: #{forward.1} parent=1 // pred_check
      _
    $region11: #{forward.1} parent=1 // pred_check_branch
      %37 = sbr.rel (0) target = $region13
    $region12: #{forward.1} parent=1 // pred_region
      %s39 = ssub.s32 1280, 1280
      %40 = vsyncadd [#allocation6], %s39
      %s41 = sshll.u32 [#allocation7], 4
      %s42 = int_to_ptr.vmem [resolvable:$true] %s41
      %47 = dma.hbm_to_vmem [thread:$0]  %s2, 1280, %s42, [#allocation6], 128, 128, 8
    $region13: #{forward.1} parent=1 // pred_fallthru
      _
    // Predicated region
    $region14: #{forward.1} parent=1 // pred_check
      _
    $region15: #{forward.1} parent=1 // pred_check_branch
      %49 = sbr.rel (0) target = $region17
    $region16: #{forward.1} parent=1 // pred_region
      %50 = dma.done [#allocation3], 128
    $region17: #{forward.1} parent=1 // pred_fallthru
      _
    // Predicated region
    $region18: #{forward.1} parent=1 // pred_check
      _
    $region19: #{forward.1} parent=1 // pred_check_branch
      %52 = sbr.rel (0) target = $region21
    $region20: #{forward.1} parent=1 // pred_region
      %53 = dma.done [#allocation6], 256
    $region21: #{forward.1} parent=1 // pred_fallthru
      _
    // Predicated region
    $region22: #{forward.1} parent=1 // pred_check
      _
    $region23: #{forward.1} parent=1 // pred_check_branch
      %55 = sbr.rel (0) target = $region25
    $region24: #{forward.1} parent=1 // pred_region
      %56 = dma.done [#allocation6], 1280
    $region25: #{forward.1} parent=1 // pred_fallthru
      _
    %v57 = vld [vmem:[#allocation7] sm:$0xff]
    %v58 = vld [vmem:[#allocation7 + $0x8] sm:$0xff]
    %v59 = vld [vmem:[#allocation7 + $0x10] sm:$0xff]
    %v60 = vld [vmem:[#allocation7 + $0x18] sm:$0xff]
    %v61 = vld [vmem:[#allocation7 + $0x20] sm:$0xff]
    %v62 = vld [vmem:[#allocation2] sm:$0xff]
    %vm63 = vcmask 261120
    %v65 = vsel %vm63, %v62, 0
    %67 = vmatprep.subr.mxu0 0.0
    %68 = vmatpush1.msra.mxu0 %v57
    %69 = vmatprep.subr.mxu0 0.0
    %70 = vmatpush1.msra.mxu0 %v58
    %71 = vmatprep.subr.mxu0 0.0
    %72 = vmatpush1.msra.mxu0 %v59
    %73 = vmatprep.subr.mxu0 0.0
    %74 = vmatpush1.msra.mxu0 %v60
    %75 = vmatprep.subr.mxu0 0.0
    %76 = vmatpush1.msra.mxu0 0.0
    %77 = vmatprep.subr.mxu0 0.0
    %78 = vmatpush1.msra.mxu0 0.0
    %79 = vmatprep.subr.mxu0 0.0
    %80 = vmatpush1.msra.mxu0 0.0
    %81 = vmatprep.subr.mxu0 0.0
    %82 = vmatpush1.msra.mxu0 0.0
    %83 = vmatprep.subr.mxu0 0.0
    %84 = vmatpush1.msra.mxu0 0.0
    %85 = vmatprep.subr.mxu0 0.0
    %86 = vmatpush1.msra.mxu0 0.0
    %87 = vmatprep.subr.mxu0 0.0
    %88 = vmatpush1.msra.mxu0 0.0
    %89 = vmatprep.subr.mxu0 0.0
    %90 = vmatpush1.msra.mxu0 0.0
    %91 = vmatprep.subr.mxu0 0.0
    %92 = vmatpush1.msra.mxu0 0.0
    %93 = vmatprep.subr.mxu0 0.0
    %94 = vmatpush1.msra.mxu0 0.0
    %95 = vmatprep.subr.mxu0 0.0
    %96 = vmatpush1.msra.mxu0 0.0
    %97 = vmatprep.subr.mxu0 0.0
    %98 = vmatpush1.msra.mxu0 0.0
    %99 = vmatprep.subr.mxu0 0.0
    %100 = vmatpush1.msra.mxu0 0.0
    %101 = vmatprep.subr.mxu0 0.0
    %102 = vmatpush1.msra.mxu0 0.0
    %103 = vmatprep.subr.mxu0 0.0
    %104 = vmatpush1.msra.mxu0 0.0
    %105 = vmatprep.subr.mxu0 0.0
    %106 = vmatpush1.msra.mxu0 0.0
    %107 = vmatprep.subr.mxu0 0.0
    %108 = vmatpush1.msra.mxu0 0.0
    %109 = vmatprep.subr.mxu0 0.0
    %110 = vmatpush1.msra.mxu0 0.0
    %111 = vmatprep.subr.mxu0 0.0
    %112 = vmatpush1.msra.mxu0 0.0
    %113 = vmatprep.subr.mxu0 0.0
    %114 = vmatpush1.msra.mxu0 0.0
    %115 = vmatprep.subr.mxu0 0.0
    %116 = vmatpush1.msra.mxu0 0.0
    %117 = vmatprep.subr.mxu0 0.0
    %118 = vmatpush1.msra.mxu0 0.0
    %119 = vmatprep.subr.mxu0 0.0
    %120 = vmatpush1.msra.mxu0 0.0
    %121 = vmatprep.subr.mxu0 0.0
    %122 = vmatpush1.msra.mxu0 0.0
    %123 = vmatprep.subr.mxu0 0.0
    %124 = vmatpush1.msra.mxu0 0.0
    %125 = vmatprep.subr.mxu0 0.0
    %126 = vmatpush1.msra.mxu0 0.0
    %127 = vmatprep.subr.mxu0 0.0
    %128 = vmatpush1.msra.mxu0 0.0
    %129 = vmatprep.subr.mxu0 0.0
    %130 = vmatpush1.msra.mxu0 0.0
    %131 = vmatprep.mubr.f32.mxu0 0.0
    %132 = vmatmul.mubr.f32.gmra.mrb[0].mxu0 %v65
    %v133 = vpop.f32.mrb[0].mxu0
    %v134 = vadd.f32 0.0, %v133
    %v135 = vpop.f32.mrb[0].mxu0
    %136 = vdwg.mxu0
    %v137 = vrot.slane %v134, 4
    %v138 = vadd.f32 %v134, %v137
    %v139 = vrot.slane %v138, 2
    %v140 = vadd.f32 %v138, %v139
    %v141 = vrot.slane %v140, 1
    %v142 = vadd.f32 %v140, %v141
    %v143 = vmul.f32 %v134, %v134
    %v144 = vrot.slane %v143, 4
    %v145 = vadd.f32 %v143, %v144
    %v146 = vrot.slane %v145, 2
    %v147 = vadd.f32 %v145, %v146
    %v148 = vrot.slane %v147, 1
    %v149 = vadd.f32 %v147, %v148
    %v150 = vmul.f32 %v142, 0.125
    %v151 = vmul.f32 %v149, 0.125
    %v152 = vmul.f32 %v150, %v150
    %v153 = vsub.f32 %v151, %v152
    %v154 = vmax.f32 %v153, 0.0
    %v155 = vadd.f32 %v154, 1e-05
    %v156 = vrsqrt.pop %v155
    %v157 = vmul.f32 %v61, %v156
    %v158 = vsub.f32 %v134, %v150
    %v159 = vlaneseq
    %v160 = vshrl.u32 %v159, 7
    %v161 = vsub.s32 0, %v160
    %v162 = vrot.slane %v157, %v161
    %v163 = vmul.f32 %v158, %v162
    %v164 = vlaneseq
    %v165 = vshrl.u32 %v164, 7
    %v166 = vsub.s32 1, %v165
    %v167 = vrot.slane %v61, %v166
    %v168 = vadd.f32 %v163, %v167
    %v169 = vmax.f32 %v168, 0.0
    %170 = vst [vmem:[#allocation8] sm:$0xff] %v169
    %s171 = scalar_lea.vmem [#allocation7], 40
    %v172 = vld [vmem:[%s171] sm:$0xff]
    %v173 = vld [vmem:[%s171 + $0x8] sm:$0xff]
    %v174 = vld [vmem:[%s171 + $0x10] sm:$0xff]
    %v175 = vld [vmem:[%s171 + $0x18] sm:$0xff]
    %v176 = vld [vmem:[%s171 + $0x20] sm:$0xff]
    %v177 = vld [vmem:[#allocation5] sm:$0xff]
    %v178 = vld [vmem:[#allocation5 + $0x8] sm:$0xf]
    %v180 = vsel %vm63, %v177, 0
    %v183 = vsel %vm63, %v178, 0
    %185 = vmatprep.subr.mxu0 0.0
    %186 = vmatpush1.msra.mxu0 %v172
    %187 = vmatprep.subr.mxu0 0.0
    %188 = vmatpush1.msra.mxu0 %v173
    %189 = vmatprep.subr.mxu0 0.0
    %190 = vmatpush1.msra.mxu0 %v174
    %191 = vmatprep.subr.mxu0 0.0
    %192 = vmatpush1.msra.mxu0 %v175
    %193 = vmatprep.subr.mxu0 0.0
    %194 = vmatpush1.msra.mxu0 0.0
    %195 = vmatprep.subr.mxu0 0.0
    %196 = vmatpush1.msra.mxu0 0.0
    %197 = vmatprep.subr.mxu0 0.0
    %198 = vmatpush1.msra.mxu0 0.0
    %199 = vmatprep.subr.mxu0 0.0
    %200 = vmatpush1.msra.mxu0 0.0
    %201 = vmatprep.subr.mxu0 0.0
    %202 = vmatpush1.msra.mxu0 0.0
    %203 = vmatprep.subr.mxu0 0.0
    %204 = vmatpush1.msra.mxu0 0.0
    %205 = vmatprep.subr.mxu0 0.0
    %206 = vmatpush1.msra.mxu0 0.0
    %207 = vmatprep.subr.mxu0 0.0
    %208 = vmatpush1.msra.mxu0 0.0
    %209 = vmatprep.subr.mxu0 0.0
    %210 = vmatpush1.msra.mxu0 0.0
    %211 = vmatprep.subr.mxu0 0.0
    %212 = vmatpush1.msra.mxu0 0.0
    %213 = vmatprep.subr.mxu0 0.0
    %214 = vmatpush1.msra.mxu0 0.0
    %215 = vmatprep.subr.mxu0 0.0
    %216 = vmatpush1.msra.mxu0 0.0
    %217 = vmatprep.subr.mxu0 0.0
    %218 = vmatpush1.msra.mxu0 0.0
    %219 = vmatprep.subr.mxu0 0.0
    %220 = vmatpush1.msra.mxu0 0.0
    %221 = vmatprep.subr.mxu0 0.0
    %222 = vmatpush1.msra.mxu0 0.0
    %223 = vmatprep.subr.mxu0 0.0
    %224 = vmatpush1.msra.mxu0 0.0
    %225 = vmatprep.subr.mxu0 0.0
    %226 = vmatpush1.msra.mxu0 0.0
    %227 = vmatprep.subr.mxu0 0.0
    %228 = vmatpush1.msra.mxu0 0.0
    %229 = vmatprep.subr.mxu0 0.0
    %230 = vmatpush1.msra.mxu0 0.0
    %231 = vmatprep.subr.mxu0 0.0
    %232 = vmatpush1.msra.mxu0 0.0
    %233 = vmatprep.subr.mxu0 0.0
    %234 = vmatpush1.msra.mxu0 0.0
    %235 = vmatprep.subr.mxu0 0.0
    %236 = vmatpush1.msra.mxu0 0.0
    %237 = vmatprep.subr.mxu0 0.0
    %238 = vmatpush1.msra.mxu0 0.0
    %239 = vmatprep.subr.mxu0 0.0
    %240 = vmatpush1.msra.mxu0 0.0
    %241 = vmatprep.subr.mxu0 0.0
    %242 = vmatpush1.msra.mxu0 0.0
    %243 = vmatprep.subr.mxu0 0.0
    %244 = vmatpush1.msra.mxu0 0.0
    %245 = vmatprep.subr.mxu0 0.0
    %246 = vmatpush1.msra.mxu0 0.0
    %247 = vmatprep.subr.mxu0 0.0
    %248 = vmatpush1.msra.mxu0 0.0
    %249 = vmatprep.mubr.f32.mxu0 0.0
    %250 = vmatmul.mubr.f32.gmra.mrb[0].mxu0 %v180
    %v251 = vpop.f32.mrb[0].mxu0
    %v252 = vadd.f32 0.0, %v251
    %v253 = vpop.f32.mrb[0].mxu0
    %254 = vmatprep.mubr.f32.mxu0 0.0
    %255 = vmatmul.mubr.f32.gmra.mrb[0].mxu0 %v183
    %v256 = vpop.f32.mrb[0].mxu0
    %v257 = vadd.f32 0.0, %v256
    %v258 = vpop.f32.mrb[0].mxu0
    %259 = vdwg.mxu0
    %vm260 = vcmask 1043456
    %v261 = vsel %vm260, %v257, 0.0
    %v262 = vadd.f32 %v252, %v261
    %v263 = vrot.slane %v262, 4
    %v264 = vadd.f32 %v262, %v263
    %v265 = vrot.slane %v264, 2
    %v266 = vadd.f32 %v264, %v265
    %v267 = vrot.slane %v266, 1
    %v268 = vadd.f32 %v266, %v267
    %v269 = vmul.f32 %v252, %v252
    %v270 = vmul.f32 %v257, %v257
    %v271 = vsel %vm260, %v270, 0.0
    %v272 = vadd.f32 %v269, %v271
    %v273 = vrot.slane %v272, 4
    %v274 = vadd.f32 %v272, %v273
    %v275 = vrot.slane %v274, 2
    %v276 = vadd.f32 %v274, %v275
    %v277 = vrot.slane %v276, 1
    %v278 = vadd.f32 %v276, %v277
    %v279 = vmul.f32 %v268, 0.083333336
    %v280 = vmul.f32 %v278, 0.083333336
    %v281 = vmul.f32 %v279, %v279
    %v282 = vsub.f32 %v280, %v281
    %v283 = vmax.f32 %v282, 0.0
    %v284 = vadd.f32 %v283, 1e-05
    %v285 = vrsqrt.pop %v284
    %v286 = vmul.f32 %v176, %v285
    %v287 = vsub.f32 %v252, %v279
    %v288 = vsub.f32 %v257, %v279
    %v289 = vlaneseq
    %v290 = vshrl.u32 %v289, 7
    %v291 = vsub.s32 0, %v290
    %v292 = vrot.slane %v286, %v291
    %v293 = vmul.f32 %v287, %v292
    %v294 = vmul.f32 %v288, %v292
    %v295 = vlaneseq
    %v296 = vshrl.u32 %v295, 7
    %v297 = vsub.s32 1, %v296
    %v298 = vrot.slane %v176, %v297
    %v299 = vadd.f32 %v293, %v298
    %v300 = vadd.f32 %v294, %v298
    %v301 = vmax.f32 %v299, 0.0
    %v302 = vmax.f32 %v300, 0.0
    %303 = vst [vmem:[#allocation9] sm:$0xff] %v301
    %304 = vst [vmem:[#allocation9 + $0x8] sm:$0xf] %v302
    // Predicated region
    $region26: #{forward.1} parent=1 // pred_check
      _
    $region27: #{forward.1} parent=1 // pred_check_branch
      %306 = sbr.rel (0) target = $region29
    $region28: #{forward.1} parent=1 // pred_region
      %s308 = ssub.s32 128, 128
      %309 = vsyncadd [#allocation4], %s308
      %s311 = sshll.u32 [#allocation8], 4
      %s312 = int_to_ptr.vmem [resolvable:$true] %s311
      %314 = dma.vmem_to_hbm [thread:$0]  %s312, 128, %s3, [#allocation4]
    $region29: #{forward.1} parent=1 // pred_fallthru
      _
    // Predicated region
    $region30: #{forward.1} parent=1 // pred_check
      _
    $region31: #{forward.1} parent=1 // pred_check_branch
      %316 = sbr.rel (0) target = $region33
    $region32: #{forward.1} parent=1 // pred_region
      %s318 = ssub.s32 256, 256
      %319 = vsyncadd [#allocation10], %s318
      %s320 = sshll.u32 [#allocation9], 4
      %s321 = int_to_ptr.vmem [resolvable:$true] %s320
      %326 = dma.vmem_to_hbm [thread:$0]  %s321, 256, %s4, [#allocation10], 128, 128, 8
    $region33: #{forward.1} parent=1 // pred_fallthru
      _
    // Predicated region
    $region34: #{forward.1} parent=1 // pred_check
      _
    $region35: #{forward.1} parent=1 // pred_check_branch
      %328 = sbr.rel (0) target = $region37
    $region36: #{forward.1} parent=1 // pred_region
      %329 = dma.done [#allocation4], 128
    $region37: #{forward.1} parent=1 // pred_fallthru
      _
    // Predicated region
    $region38: #{forward.1} parent=1 // pred_check
      _
    $region39: #{forward.1} parent=1 // pred_check_branch
      %331 = sbr.rel (0) target = $region41
    $region40: #{forward.1} parent=1 // pred_region
      %332 = dma.done [#allocation10], 256
    $region41: #{forward.1} parent=1 // pred_fallthru
      _
    %333 = vsyncpa [#allocation3], 1
    %334 = vsyncpa [#allocation6], 1
    %335 = vsyncpa [#allocation4], 1
    %336 = vsyncpa [#allocation10], 1

</llo_original>
